<compile_context>
chip_gen: v7x
topology: tpu7x:2x2x1
jax: 0.10.0
libtpu: 0.0.40
codegen_flags: <defaults>
</compile_context>

<pallas_src>
import jax
import jax.numpy as jnp
from jax.experimental import pallas as pl
from jax.experimental.pallas import tpu as pltpu


def _round_up(x, m):
    return ((x + m - 1) // m) * m


def _make_kernel(hp_dim, latent, n_emo_out, embed_dim, row_offsets, out_w):
    r_bias, r_wh, r_wml, r_wdz, r_emb = row_offsets

    def kernel(act_ref, prm_ref, out_ref):
        # ---- single lane-dense activation load: [ hidden_prior | eps | pad ] ----
        act = act_ref[...].astype(jnp.float32)               # upcast in-kernel (no-op if f32)
        hp = act[:, :hp_dim]                                  # [B, Hp]
        eps = act[:, hp_dim:hp_dim + latent]                  # [B, L]

        # ---- single param-slab load, static slices (layout prepped in wrapper) ----
        prm = prm_ref[...]                                    # [rows, 128] f32
        b_h = prm[r_bias:r_bias + 1, 0:latent]                # [1, L]
        b_ml = prm[r_bias:r_bias + 1, latent:3 * latent]      # [1, 2L]
        b_dz = prm[r_bias:r_bias + 1, 3 * latent:3 * latent + n_emo_out]
        w_h = prm[r_wh:r_wh + hp_dim, 0:latent]               # [Hp, L]
        w_ml = prm[r_wml:r_wml + latent, 0:2 * latent]        # [L, 2L]
        w_dz = prm[r_wdz:r_wdz + latent, 0:n_emo_out]         # [L, n_out]
        emb = prm[r_emb:r_emb + n_emo_out, 0:embed_dim]       # [n_out, E]

        # ---- prior(): h1 = relu(Linear(hidden_prior)) ----
        h1 = jnp.maximum(
            jnp.dot(hp, w_h, preferred_element_type=jnp.float32) + b_h, 0.0)

        # ---- fused mu / logvar projection (one MXU push) ----
        ml = jnp.dot(h1, w_ml, preferred_element_type=jnp.float32) + b_ml
        mu = ml[:, :latent]
        logvar = ml[:, latent:]

        # ---- reparameterize: z = mu + eps * exp(0.5*logvar) ----
        z = mu + eps * jnp.exp(0.5 * logvar)

        # ---- Dense_z_prior + softmax / log-softmax ----
        logits = jnp.dot(z, w_dz, preferred_element_type=jnp.float32) + b_dz
        m = jnp.max(logits, axis=-1, keepdims=True)
        e = jnp.exp(logits - m)
        s = jnp.sum(e, axis=-1, keepdims=True)
        # Exact reciprocal: approx=True (EUP vrcp) risks the 1e-5 tolerance.
        p = e * pl.reciprocal(s, approx=False)
        logp = (logits - m) - jnp.log(s)

        emb_out = jnp.dot(p, emb, preferred_element_type=jnp.float32)

        # ---- ONE lane-dense output slab: [ emb | mu|logvar | logp | z | pad ] ----
        used = embed_dim + 3 * latent + n_emo_out
        parts = [emb_out, ml, logp, z]
        pad = out_w - used
        if pad:
            parts.append(jnp.zeros((out_ref.shape[0], pad), jnp.float32))
        out_ref[...] = jnp.concatenate(parts, axis=-1)

    return kernel


def emo_trans_vae_forward(hidden_prior, p_emo_in, p_strat, eps, params):
    """Matches EmoTransVAE_MultiStrat_Light.forward (eval mode, explicit eps)."""
    del p_emo_in, p_strat  # dead inputs in the reference forward()
    w_h, b_h, w_mu, b_mu, w_lv, b_lv, w_dz, b_dz, emb = params

    b = hidden_prior.shape[0]
    hp_dim = w_h.shape[0]
    latent = w_mu.shape[-1]
    n_emo_out, embed_dim = emb.shape

    lane_w = 128
    assert 3 * latent + n_emo_out <= lane_w and max(2 * latent, embed_dim, n_emo_out) <= lane_w, \
        "param-slab packing assumes per-block width <= 128 lanes"
    assert hp_dim + latent <= lane_w, "activation-slab packing assumes Hp + L <= 128 lanes"

    # ---- one-time parameter slab (rows padded to 8, lane width 128) ----
    def pad_block(a):
        rows = _round_up(a.shape[0], 8)
        blk = jnp.zeros((rows, lane_w), jnp.float32)
        return blk.at[:a.shape[0], :a.shape[1]].set(a.astype(jnp.float32))

    bias_row = jnp.concatenate([b_h, b_mu, b_lv, b_dz], axis=-1)[None, :]  # [1, 3L+n_out]
    w_ml = jnp.concatenate([w_mu, w_lv], axis=-1)                          # [L, 2L]
    blocks = [pad_block(bias_row), pad_block(w_h), pad_block(w_ml),
              pad_block(w_dz), pad_block(emb)]
    row_offsets, off = [], 0
    for blk in blocks:
        row_offsets.append(off)
        off += blk.shape[0]
    prm_slab = jnp.concatenate(blocks, axis=0)                             # [rows, 128] f32

    # ---- activation slab in NATIVE dtype (no wrapper upcast), batch padded to 8 ----
    act_dtype = jnp.result_type(hidden_prior.dtype, eps.dtype)
    b_pad = _round_up(max(b, 1), 8)
    act = jnp.zeros((b_pad, lane_w), act_dtype)
    act = act.at[:b, :hp_dim].set(hidden_prior.astype(act_dtype))
    act = act.at[:b, hp_dim:hp_dim + latent].set(eps.astype(act_dtype))

    # ---- single lane-dense output slab ----
    used = embed_dim + 3 * latent + n_emo_out
    out_w = _round_up(used, lane_w)

    flops = 2 * b_pad * (hp_dim * latent + latent * 2 * latent
                         + latent * n_emo_out + n_emo_out * embed_dim)
    transcendentals = b_pad * (latent + n_emo_out + 2)
    bytes_accessed = (act.size * act.dtype.itemsize
                      + prm_slab.size * 4 + b_pad * out_w * 4)

    kernel = _make_kernel(hp_dim, latent, n_emo_out, embed_dim,
                          tuple(row_offsets), out_w)

    vmem = pl.BlockSpec(memory_space=pltpu.MemorySpace.VMEM)
    out = pl.pallas_call(
        kernel,
        out_shape=jax.ShapeDtypeStruct((b_pad, out_w), jnp.float32),
        in_specs=[vmem, vmem],
        out_specs=vmem,
        cost_estimate=pl.CostEstimate(flops=int(flops),
                                      transcendentals=int(transcendentals),
                                      bytes_accessed=int(bytes_accessed)),
    )(act, prm_slab)

    # ---- cheap XLA slices back into the five results ----
    o = 0
    emb_out = out[:b, o:o + embed_dim]; o += embed_dim
    mu = out[:b, o:o + latent]; o += latent
    logvar = out[:b, o:o + latent]; o += latent
    log_prob = out[:b, o:o + n_emo_out]; o += n_emo_out
    z = out[:b, o:o + latent]

    # Match torch: emo_out_emb is [B, 1, embed_dim].
    return emb_out.reshape(b, 1, embed_dim), mu, logvar, log_prob, z


def _reference(hidden_prior, eps, params):
    w_h, b_h, w_mu, b_mu, w_lv, b_lv, w_dz, b_dz, emb = params
    h1 = jax.nn.relu(hidden_prior @ w_h + b_h)
    mu = h1 @ w_mu + b_mu
    logvar = h1 @ w_lv + b_lv
    z = mu + eps * jnp.exp(0.5 * logvar)
    logits = z @ w_dz + b_dz
    p = jax.nn.softmax(logits, axis=-1)
    emb_out = (p @ emb)[:, None, :]
    return emb_out, mu, logvar, jnp.log(p), z


if __name__ == "__main__":
    # Small, module-consistent shapes:
    #   d_model=32, sample_strat_emb=False, use_cat_attn=False
    #   -> hidden_dim_prior = 32, latent_dim = 16
    B, D_MODEL, N_EMO_IN, N_EMO_OUT, N_STRAT, EMBED_DIM = 4, 32, 8, 8, 6, 32
    LATENT = D_MODEL // 2

    key = jax.random.PRNGKey(0)
    ks = jax.random.split(key, 12)

    hidden_prior = jax.random.normal(ks[0], (B, D_MODEL), jnp.float32)
    p_emo_in = jax.random.normal(ks[1], (B, N_EMO_IN), jnp.float32)   # dead code in forward()
    p_strat = jax.random.normal(ks[2], (B, N_STRAT), jnp.float32)     # dead code in forward()
    eps = jax.random.normal(ks[3], (B, LATENT), jnp.float32)          # reparameterize noise

    scale = 0.1
    params = (
        scale * jax.random.normal(ks[4], (D_MODEL, LATENT), jnp.float32),     # W_h_prior_emo
        scale * jax.random.normal(ks[5], (LATENT,), jnp.float32),             # b_h_prior_emo
        scale * jax.random.normal(ks[6], (LATENT, LATENT), jnp.float32),      # W_mu_prior
        scale * jax.random.normal(ks[7], (LATENT,), jnp.float32),             # b_mu_prior
        scale * jax.random.normal(ks[8], (LATENT, LATENT), jnp.float32),      # W_logvar_prior
        scale * jax.random.normal(ks[9], (LATENT,), jnp.float32),             # b_logvar_prior
        scale * jax.random.normal(ks[10], (LATENT, N_EMO_OUT), jnp.float32),  # W_Dense_z_prior
        jnp.zeros((N_EMO_OUT,), jnp.float32),                                 # b_Dense_z_prior
        jax.random.normal(ks[11], (N_EMO_OUT, EMBED_DIM), jnp.float32),       # emotion_embedding
    )

    emb_out, mu, logvar, log_prob, z = emo_trans_vae_forward(
        hidden_prior, p_emo_in, p_strat, eps, params)
    jax.block_until_ready((emb_out, mu, logvar, log_prob, z))

    r_emb, r_mu, r_lv, r_lp, r_z = _reference(hidden_prior, eps, params)

    assert emb_out.shape == (B, 1, EMBED_DIM)
    assert mu.shape == (B, LATENT) and logvar.shape == (B, LATENT)
    assert log_prob.shape == (B, N_EMO_OUT) and z.shape == (B, LATENT)
    assert jnp.allclose(emb_out, r_emb, atol=1e-5, rtol=1e-5)
    assert jnp.allclose(mu, r_mu, atol=1e-5, rtol=1e-5)
    assert jnp.allclose(logvar, r_lv, atol=1e-5, rtol=1e-5)
    assert jnp.allclose(log_prob, r_lp, atol=1e-5, rtol=1e-5)
    assert jnp.allclose(z, r_z, atol=1e-5, rtol=1e-5)

    print("KERNEL_OK")
</pallas_src>

<mosaic_0001>
module attributes {stable_mosaic.version = 11 : i64} {
  func.func @kernel(%arg0: memref<8x128xf32, #tpu.memory_space<vmem>>, %arg1: memref<80x128xf32, #tpu.memory_space<vmem>>, %arg2: memref<8x128xf32, #tpu.memory_space<vmem>>) attributes {dimension_semantics = [], scalar_prefetch = 0 : i64, scratch_operands = 0 : i64, tpu.core_type = #tpu.core_type<tc>} {
    %c0 = arith.constant 0 : index
    %c0_0 = arith.constant 0 : index
    %0 = vector.load %arg0[%c0, %c0_0] : memref<8x128xf32, #tpu.memory_space<vmem>>, vector<8x128xf32>
    %1 = vector.extract_strided_slice %0 {offsets = [0, 0], sizes = [8, 32], strides = [1, 1]} : vector<8x128xf32> to vector<8x32xf32>
    %2 = vector.extract_strided_slice %0 {offsets = [0, 32], sizes = [8, 16], strides = [1, 1]} : vector<8x128xf32> to vector<8x16xf32>
    %c0_1 = arith.constant 0 : index
    %c0_2 = arith.constant 0 : index
    %3 = vector.load %arg1[%c0_1, %c0_2] : memref<80x128xf32, #tpu.memory_space<vmem>>, vector<80x128xf32>
    %4 = vector.extract_strided_slice %3 {offsets = [0, 0], sizes = [1, 16], strides = [1, 1]} : vector<80x128xf32> to vector<1x16xf32>
    %5 = vector.extract_strided_slice %3 {offsets = [0, 16], sizes = [1, 32], strides = [1, 1]} : vector<80x128xf32> to vector<1x32xf32>
    %6 = vector.extract_strided_slice %3 {offsets = [0, 48], sizes = [1, 8], strides = [1, 1]} : vector<80x128xf32> to vector<1x8xf32>
    %7 = vector.extract_strided_slice %3 {offsets = [8, 0], sizes = [32, 16], strides = [1, 1]} : vector<80x128xf32> to vector<32x16xf32>
    %8 = vector.extract_strided_slice %3 {offsets = [40, 0], sizes = [16, 32], strides = [1, 1]} : vector<80x128xf32> to vector<16x32xf32>
    %9 = vector.extract_strided_slice %3 {offsets = [56, 0], sizes = [16, 8], strides = [1, 1]} : vector<80x128xf32> to vector<16x8xf32>
    %10 = vector.extract_strided_slice %3 {offsets = [72, 0], sizes = [8, 32], strides = [1, 1]} : vector<80x128xf32> to vector<8x32xf32>
    %cst = arith.constant dense<0.000000e+00> : vector<8x16xf32>
    %11 = tpu.matmul %1, %7, %cst {dimension_numbers = #tpu.dot_dimension_numbers<[1], [0], [0], [1], [0, 0, 1, 1], [], []>} : vector<8x32xf32>, vector<32x16xf32>, vector<8x16xf32> -> vector<8x16xf32>
    %12 = vector.broadcast %4 : vector<1x16xf32> to vector<8x16xf32>
    %13 = arith.addf %11, %12 : vector<8x16xf32>
    %cst_3 = arith.constant 0.000000e+00 : f32
    %14 = vector.broadcast %cst_3 : f32 to vector<8x16xf32>
    %15 = arith.maximumf %13, %14 : vector<8x16xf32>
    %cst_4 = arith.constant dense<0.000000e+00> : vector<8x32xf32>
    %16 = tpu.matmul %15, %8, %cst_4 {dimension_numbers = #tpu.dot_dimension_numbers<[1], [0], [0], [1], [0, 0, 1, 1], [], []>} : vector<8x16xf32>, vector<16x32xf32>, vector<8x32xf32> -> vector<8x32xf32>
    %17 = vector.broadcast %5 : vector<1x32xf32> to vector<8x32xf32>
    %18 = arith.addf %16, %17 : vector<8x32xf32>
    %19 = vector.extract_strided_slice %18 {offsets = [0, 0], sizes = [8, 16], strides = [1, 1]} : vector<8x32xf32> to vector<8x16xf32>
    %20 = vector.extract_strided_slice %18 {offsets = [0, 16], sizes = [8, 16], strides = [1, 1]} : vector<8x32xf32> to vector<8x16xf32>
    %cst_5 = arith.constant 5.000000e-01 : f32
    %21 = vector.broadcast %cst_5 : f32 to vector<8x16xf32>
    %22 = arith.mulf %21, %20 : vector<8x16xf32>
    %23 = math.exp %22 : vector<8x16xf32>
    %24 = arith.mulf %2, %23 : vector<8x16xf32>
    %25 = arith.addf %19, %24 : vector<8x16xf32>
    %cst_6 = arith.constant dense<0.000000e+00> : vector<8x8xf32>
    %26 = tpu.matmul %25, %9, %cst_6 {dimension_numbers = #tpu.dot_dimension_numbers<[1], [0], [0], [1], [0, 0, 1, 1], [], []>} : vector<8x16xf32>, vector<16x8xf32>, vector<8x8xf32> -> vector<8x8xf32>
    %27 = vector.broadcast %6 : vector<1x8xf32> to vector<8x8xf32>
    %28 = arith.addf %26, %27 : vector<8x8xf32>
    %cst_7 = arith.constant dense<0xFF800000> : vector<8xf32>
    %29 = vector.multi_reduction <maximumf>, %28, %cst_7 [1] : vector<8x8xf32> to vector<8xf32>
    %30 = vector.shape_cast %29 : vector<8xf32> to vector<8x1xf32>
    %31 = vector.broadcast %30 : vector<8x1xf32> to vector<8x8xf32>
    %32 = arith.subf %28, %31 : vector<8x8xf32>
    %33 = math.exp %32 : vector<8x8xf32>
    %cst_8 = arith.constant dense<0.000000e+00> : vector<8xf32>
    %34 = vector.multi_reduction <add>, %33, %cst_8 [1] : vector<8x8xf32> to vector<8xf32>
    %35 = vector.shape_cast %34 : vector<8xf32> to vector<8x1xf32>
    %36 = tpu.reciprocal %35 : vector<8x1xf32> -> vector<8x1xf32>
    %37 = vector.broadcast %36 : vector<8x1xf32> to vector<8x8xf32>
    %38 = arith.mulf %33, %37 : vector<8x8xf32>
    %39 = vector.broadcast %30 : vector<8x1xf32> to vector<8x8xf32>
    %40 = arith.subf %28, %39 : vector<8x8xf32>
    %41 = math.log %35 : vector<8x1xf32>
    %42 = vector.broadcast %41 : vector<8x1xf32> to vector<8x8xf32>
    %43 = arith.subf %40, %42 : vector<8x8xf32>
    %cst_9 = arith.constant dense<0.000000e+00> : vector<8x32xf32>
    %44 = tpu.matmul %38, %10, %cst_9 {dimension_numbers = #tpu.dot_dimension_numbers<[1], [0], [0], [1], [0, 0, 1, 1], [], []>} : vector<8x8xf32>, vector<8x32xf32>, vector<8x32xf32> -> vector<8x32xf32>
    %cst_10 = arith.constant 0.000000e+00 : f32
    %45 = vector.broadcast %cst_10 : f32 to vector<8x40xf32>
    %46 = tpu.concatenate %44, %18, %43, %25, %45 in 1 : vector<8x32xf32>, vector<8x32xf32>, vector<8x8xf32>, vector<8x16xf32>, vector<8x40xf32> -> vector<8x128xf32>
    %c0_11 = arith.constant 0 : index
    %c0_12 = arith.constant 0 : index
    %47 = vector.load %arg2[%c0_11, %c0_12] : memref<8x128xf32, #tpu.memory_space<vmem>>, vector<8x128xf32>
    tpu.vector_store %arg2[%c0_11, %c0_12], %46 {strides = array<i32>} : memref<8x128xf32, #tpu.memory_space<vmem>>, vector<8x128xf32>,
    return
  }
}

</mosaic_0001>

<llo_original>
// kernel: tpu_custom_call.1
$region0: #{tpu_custom_call.1}
  #allocation0 [shape = 'u32[]', space=smem, size = 0x4, offset = 0x4, fixed_abs, tag = 'smem constant byte address 0x4 - core index']
  #allocation1 [shape = 'u32[144,128]{1,0:T(1,128)}', space=vmem, size = 0x12000, scoped, tag = 'internal scratch']
  %s0 = inlined_call_operand.hbm [shape: f32[8,128], index: 0, kind: input, shape index: {}]
  %s1 = inlined_call_operand.hbm [shape: f32[80,128], index: 1, kind: input, shape index: {}]
  %s2 = inlined_call_operand.hbm [shape: f32[8,128], index: 2, kind: output, shape index: {}]
  %s3 = sld [smem:[#allocation0]]
  $region26: #{tpu_custom_call.1} parent=0
    _
  %s5 = ssub.s32 1, %s3
  %s6 = scalar_select 0, %s5, %s3
  $region1: #{tpu_custom_call.1} parent=0
    #allocation2 [shape = 'u8[4096]{0}', space=vmem, size = 0x1000, scoped, tag = 'input window, operand 0, single buffered']
    #allocation3 [shape = 's32[1]{0}', space=sflag, size = 0x4, scoped, tag = 'scoped memory for tpu_custom_call.1']
    #allocation4 [shape = 's32[1]{0}', space=sflag, size = 0x4, scoped, tag = 'scoped memory for tpu_custom_call.1']
    #allocation5 [shape = 'u8[40960]{0}', space=vmem, size = 0xa000, scoped, tag = 'input window, operand 1, single buffered']
    #allocation6 [shape = 's32[1]{0}', space=sflag, size = 0x4, scoped, tag = 'scoped memory for tpu_custom_call.1']
    #allocation7 [shape = 'u8[4096]{0}', space=vmem, size = 0x1000, scoped, tag = 'output window, operand 0, single buffered']
    %7 = vsyncpa [#allocation3], 0
    %8 = vsyncpa [#allocation6], 0
    %9 = vsyncpa [#allocation4], 0
    // Predicated region
    $region2: #{tpu_custom_call.1} parent=1 // pred_check
      _
    $region3: #{tpu_custom_call.1} parent=1 // pred_check_branch
      %11 = sbr.rel (0) target = $region5
    $region4: #{tpu_custom_call.1} parent=1 // pred_region
      %s13 = ssub.s32 128, 128
      %14 = vsyncadd [#allocation3], %s13
      %s16 = sshll.u32 [#allocation2], 4
      %s17 = int_to_ptr.vmem [resolvable:$true] %s16
      %19 = dma.hbm_to_vmem [thread:$0]  %s0, 128, %s17, [#allocation3]
    $region5: #{tpu_custom_call.1} parent=1 // pred_fallthru
      _
    // Predicated region
    $region6: #{tpu_custom_call.1} parent=1 // pred_check
      _
    $region7: #{tpu_custom_call.1} parent=1 // pred_check_branch
      %21 = sbr.rel (0) target = $region9
    $region8: #{tpu_custom_call.1} parent=1 // pred_region
      %s23 = ssub.s32 1280, 1280
      %24 = vsyncadd [#allocation6], %s23
      %s25 = sshll.u32 [#allocation5], 4
      %s26 = int_to_ptr.vmem [resolvable:$true] %s25
      %31 = dma.hbm_to_vmem [thread:$0]  %s1, 1280, %s26, [#allocation6], 128, 128, 8
    $region9: #{tpu_custom_call.1} parent=1 // pred_fallthru
      _
    // Predicated region
    $region10: #{tpu_custom_call.1} parent=1 // pred_check
      _
    $region11: #{tpu_custom_call.1} parent=1 // pred_check_branch
      %33 = sbr.rel (0) target = $region13
    $region12: #{tpu_custom_call.1} parent=1 // pred_region
      %34 = dma.done [#allocation3], 128
    $region13: #{tpu_custom_call.1} parent=1 // pred_fallthru
      _
    // Predicated region
    $region14: #{tpu_custom_call.1} parent=1 // pred_check
      _
    $region15: #{tpu_custom_call.1} parent=1 // pred_check_branch
      %36 = sbr.rel (0) target = $region17
    $region16: #{tpu_custom_call.1} parent=1 // pred_region
      %37 = dma.done [#allocation6], 1280
    $region17: #{tpu_custom_call.1} parent=1 // pred_fallthru
      _
    %v38 = vld [vmem:[#allocation2] sm:$0xff]
    %v39 = vld [vmem:[#allocation5] sm:$0xff]
    %v40 = vld [vmem:[#allocation5 + $0x8] sm:$0xff]
    %v41 = vld [vmem:[#allocation5 + $0x10] sm:$0xff]
    %v42 = vld [vmem:[#allocation5 + $0x18] sm:$0xff]
    %v43 = vld [vmem:[#allocation5 + $0x20] sm:$0xff]
    %v44 = vld [vmem:[#allocation5 + $0x28] sm:$0xff]
    %v45 = vld [vmem:[#allocation5 + $0x30] sm:$0xff]
    %v46 = vld [vmem:[#allocation5 + $0x38] sm:$0xff]
    %v47 = vld [vmem:[#allocation5 + $0x40] sm:$0xff]
    %v48 = vld [vmem:[#allocation5 + $0x48] sm:$0xff]
    %v49 = vlaneseq
    %v50 = vshrl.u32 %v49, 7
    %v51 = vsub.s32 0, %v50
    %v52 = vrot.slane %v39, %v51
    %vm53 = vcmask 261120
    %v55 = vsel %vm53, %v38, 0
    %57 = vmatprep.subr.mxu0 0.0
    %58 = vmatpush1.msra.mxu0 %v40
    %59 = vmatprep.subr.mxu0 0.0
    %60 = vmatpush1.msra.mxu0 %v41
    %61 = vmatprep.subr.mxu0 0.0
    %62 = vmatpush1.msra.mxu0 %v42
    %63 = vmatprep.subr.mxu0 0.0
    %64 = vmatpush1.msra.mxu0 %v43
    %65 = vmatprep.subr.mxu0 0.0
    %66 = vmatpush1.msra.mxu0 0.0
    %67 = vmatprep.subr.mxu0 0.0
    %68 = vmatpush1.msra.mxu0 0.0
    %69 = vmatprep.subr.mxu0 0.0
    %70 = vmatpush1.msra.mxu0 0.0
    %71 = vmatprep.subr.mxu0 0.0
    %72 = vmatpush1.msra.mxu0 0.0
    %73 = vmatprep.subr.mxu0 0.0
    %74 = vmatpush1.msra.mxu0 0.0
    %75 = vmatprep.subr.mxu0 0.0
    %76 = vmatpush1.msra.mxu0 0.0
    %77 = vmatprep.subr.mxu0 0.0
    %78 = vmatpush1.msra.mxu0 0.0
    %79 = vmatprep.subr.mxu0 0.0
    %80 = vmatpush1.msra.mxu0 0.0
    %81 = vmatprep.subr.mxu0 0.0
    %82 = vmatpush1.msra.mxu0 0.0
    %83 = vmatprep.subr.mxu0 0.0
    %84 = vmatpush1.msra.mxu0 0.0
    %85 = vmatprep.subr.mxu0 0.0
    %86 = vmatpush1.msra.mxu0 0.0
    %87 = vmatprep.subr.mxu0 0.0
    %88 = vmatpush1.msra.mxu0 0.0
    %89 = vmatprep.subr.mxu0 0.0
    %90 = vmatpush1.msra.mxu0 0.0
    %91 = vmatprep.subr.mxu0 0.0
    %92 = vmatpush1.msra.mxu0 0.0
    %93 = vmatprep.subr.mxu0 0.0
    %94 = vmatpush1.msra.mxu0 0.0
    %95 = vmatprep.subr.mxu0 0.0
    %96 = vmatpush1.msra.mxu0 0.0
    %97 = vmatprep.subr.mxu0 0.0
    %98 = vmatpush1.msra.mxu0 0.0
    %99 = vmatprep.subr.mxu0 0.0
    %100 = vmatpush1.msra.mxu0 0.0
    %101 = vmatprep.subr.mxu0 0.0
    %102 = vmatpush1.msra.mxu0 0.0
    %103 = vmatprep.subr.mxu0 0.0
    %104 = vmatpush1.msra.mxu0 0.0
    %105 = vmatprep.subr.mxu0 0.0
    %106 = vmatpush1.msra.mxu0 0.0
    %107 = vmatprep.subr.mxu0 0.0
    %108 = vmatpush1.msra.mxu0 0.0
    %109 = vmatprep.subr.mxu0 0.0
    %110 = vmatpush1.msra.mxu0 0.0
    %111 = vmatprep.subr.mxu0 0.0
    %112 = vmatpush1.msra.mxu0 0.0
    %113 = vmatprep.subr.mxu0 0.0
    %114 = vmatpush1.msra.mxu0 0.0
    %115 = vmatprep.subr.mxu0 0.0
    %116 = vmatpush1.msra.mxu0 0.0
    %117 = vmatprep.subr.mxu0 0.0
    %118 = vmatpush1.msra.mxu0 0.0
    %119 = vmatprep.subr.mxu0 0.0
    %120 = vmatpush1.msra.mxu0 0.0
    %121 = vmatprep.mubr.f32.mxu0 0.0
    %122 = vmatmul.mubr.f32.gmra.mrb[0].mxu0 %v55
    %v123 = vpop.f32.mrb[0].mxu0
    %v124 = vadd.f32 %v52, %v123
    %v125 = vpop.f32.mrb[0].mxu0
    %126 = vdwg.mxu0
    %v127 = vmax.f32 %v124, 0.0
    %129 = vrot.lane.b32.xlu0 %v52, 112
    %v130 = vpop.permute.xlu0 %129
    %vm132 = vcmask 130048
    %v134 = vsel %vm132, %v127, 0
    %136 = vmatprep.subr.mxu0 0.0
    %137 = vmatpush1.msra.mxu0 %v44
    %138 = vmatprep.subr.mxu0 0.0
    %139 = vmatpush1.msra.mxu0 %v45
    %140 = vmatprep.subr.mxu0 0.0
    %141 = vmatpush1.msra.mxu0 0.0
    %142 = vmatprep.subr.mxu0 0.0
    %143 = vmatpush1.msra.mxu0 0.0
    %144 = vmatprep.subr.mxu0 0.0
    %145 = vmatpush1.msra.mxu0 0.0
    %146 = vmatprep.subr.mxu0 0.0
    %147 = vmatpush1.msra.mxu0 0.0
    %148 = vmatprep.subr.mxu0 0.0
    %149 = vmatpush1.msra.mxu0 0.0
    %150 = vmatprep.subr.mxu0 0.0
    %151 = vmatpush1.msra.mxu0 0.0
    %152 = vmatprep.subr.mxu0 0.0
    %153 = vmatpush1.msra.mxu0 0.0
    %154 = vmatprep.subr.mxu0 0.0
    %155 = vmatpush1.msra.mxu0 0.0
    %156 = vmatprep.subr.mxu0 0.0
    %157 = vmatpush1.msra.mxu0 0.0
    %158 = vmatprep.subr.mxu0 0.0
    %159 = vmatpush1.msra.mxu0 0.0
    %160 = vmatprep.subr.mxu0 0.0
    %161 = vmatpush1.msra.mxu0 0.0
    %162 = vmatprep.subr.mxu0 0.0
    %163 = vmatpush1.msra.mxu0 0.0
    %164 = vmatprep.subr.mxu0 0.0
    %165 = vmatpush1.msra.mxu0 0.0
    %166 = vmatprep.subr.mxu0 0.0
    %167 = vmatpush1.msra.mxu0 0.0
    %168 = vmatprep.subr.mxu0 0.0
    %169 = vmatpush1.msra.mxu0 0.0
    %170 = vmatprep.subr.mxu0 0.0
    %171 = vmatpush1.msra.mxu0 0.0
    %172 = vmatprep.subr.mxu0 0.0
    %173 = vmatpush1.msra.mxu0 0.0
    %174 = vmatprep.subr.mxu0 0.0
    %175 = vmatpush1.msra.mxu0 0.0
    %176 = vmatprep.subr.mxu0 0.0
    %177 = vmatpush1.msra.mxu0 0.0
    %178 = vmatprep.subr.mxu0 0.0
    %179 = vmatpush1.msra.mxu0 0.0
    %180 = vmatprep.subr.mxu0 0.0
    %181 = vmatpush1.msra.mxu0 0.0
    %182 = vmatprep.subr.mxu0 0.0
    %183 = vmatpush1.msra.mxu0 0.0
    %184 = vmatprep.subr.mxu0 0.0
    %185 = vmatpush1.msra.mxu0 0.0
    %186 = vmatprep.subr.mxu0 0.0
    %187 = vmatpush1.msra.mxu0 0.0
    %188 = vmatprep.subr.mxu0 0.0
    %189 = vmatpush1.msra.mxu0 0.0
    %190 = vmatprep.subr.mxu0 0.0
    %191 = vmatpush1.msra.mxu0 0.0
    %192 = vmatprep.subr.mxu0 0.0
    %193 = vmatpush1.msra.mxu0 0.0
    %194 = vmatprep.subr.mxu0 0.0
    %195 = vmatpush1.msra.mxu0 0.0
    %196 = vmatprep.subr.mxu0 0.0
    %197 = vmatpush1.msra.mxu0 0.0
    %198 = vmatprep.subr.mxu0 0.0
    %199 = vmatpush1.msra.mxu0 0.0
    %200 = vmatprep.mubr.f32.mxu0 0.0
    %201 = vmatmul.mubr.f32.gmra.mrb[0].mxu0 %v134
    %v202 = vpop.f32.mrb[0].mxu0
    %v203 = vadd.f32 %v130, %v202
    %v204 = vpop.f32.mrb[0].mxu0
    %205 = vdwg.mxu0
    %v206 = vmul.f32 %v203, 0.5
    %v207 = vmul.f32 %v206, 1.442695
    %v208 = vpow.pop %v207
    %210 = vrot.lane.b32.xlu0 %v208, 16
    %v211 = vpop.permute.xlu0 %210
    %v213 = vmul.f32 %v38, %v211
    %215 = vrot.lane.b32.xlu0 %v213, 96
    %v216 = vpop.permute.xlu0 %215
    %v218 = vadd.f32 %v203, %v216
    %219 = vrot.lane.b32.xlu0 %v52, 80
    %v220 = vpop.permute.xlu0 %219
    %v223 = vsel %vm132, %v218, 0
    %225 = vmatprep.subr.mxu0 0.0
    %226 = vmatpush1.msra.mxu0 %v46
    %227 = vmatprep.subr.mxu0 0.0
    %228 = vmatpush1.msra.mxu0 %v47
    %229 = vmatprep.subr.mxu0 0.0
    %230 = vmatpush1.msra.mxu0 0.0
    %231 = vmatprep.subr.mxu0 0.0
    %232 = vmatpush1.msra.mxu0 0.0
    %233 = vmatprep.subr.mxu0 0.0
    %234 = vmatpush1.msra.mxu0 0.0
    %235 = vmatprep.subr.mxu0 0.0
    %236 = vmatpush1.msra.mxu0 0.0
    %237 = vmatprep.subr.mxu0 0.0
    %238 = vmatpush1.msra.mxu0 0.0
    %239 = vmatprep.subr.mxu0 0.0
    %240 = vmatpush1.msra.mxu0 0.0
    %241 = vmatprep.subr.mxu0 0.0
    %242 = vmatpush1.msra.mxu0 0.0
    %243 = vmatprep.subr.mxu0 0.0
    %244 = vmatpush1.msra.mxu0 0.0
    %245 = vmatprep.subr.mxu0 0.0
    %246 = vmatpush1.msra.mxu0 0.0
    %247 = vmatprep.subr.mxu0 0.0
    %248 = vmatpush1.msra.mxu0 0.0
    %249 = vmatprep.subr.mxu0 0.0
    %250 = vmatpush1.msra.mxu0 0.0
    %251 = vmatprep.subr.mxu0 0.0
    %252 = vmatpush1.msra.mxu0 0.0
    %253 = vmatprep.subr.mxu0 0.0
    %254 = vmatpush1.msra.mxu0 0.0
    %255 = vmatprep.subr.mxu0 0.0
    %256 = vmatpush1.msra.mxu0 0.0
    %257 = vmatprep.subr.mxu0 0.0
    %258 = vmatpush1.msra.mxu0 0.0
    %259 = vmatprep.subr.mxu0 0.0
    %260 = vmatpush1.msra.mxu0 0.0
    %261 = vmatprep.subr.mxu0 0.0
    %262 = vmatpush1.msra.mxu0 0.0
    %263 = vmatprep.subr.mxu0 0.0
    %264 = vmatpush1.msra.mxu0 0.0
    %265 = vmatprep.subr.mxu0 0.0
    %266 = vmatpush1.msra.mxu0 0.0
    %267 = vmatprep.subr.mxu0 0.0
    %268 = vmatpush1.msra.mxu0 0.0
    %269 = vmatprep.subr.mxu0 0.0
    %270 = vmatpush1.msra.mxu0 0.0
    %271 = vmatprep.subr.mxu0 0.0
    %272 = vmatpush1.msra.mxu0 0.0
    %273 = vmatprep.subr.mxu0 0.0
    %274 = vmatpush1.msra.mxu0 0.0
    %275 = vmatprep.subr.mxu0 0.0
    %276 = vmatpush1.msra.mxu0 0.0
    %277 = vmatprep.subr.mxu0 0.0
    %278 = vmatpush1.msra.mxu0 0.0
    %279 = vmatprep.subr.mxu0 0.0
    %280 = vmatpush1.msra.mxu0 0.0
    %281 = vmatprep.subr.mxu0 0.0
    %282 = vmatpush1.msra.mxu0 0.0
    %283 = vmatprep.subr.mxu0 0.0
    %284 = vmatpush1.msra.mxu0 0.0
    %285 = vmatprep.subr.mxu0 0.0
    %286 = vmatpush1.msra.mxu0 0.0
    %287 = vmatprep.subr.mxu0 0.0
    %288 = vmatpush1.msra.mxu0 0.0
    %289 = vmatprep.mubr.f32.mxu0 0.0
    %290 = vmatmul.mubr.f32.gmra.mrb[0].mxu0 %v223
    %v291 = vpop.f32.mrb[0].mxu0
    %v292 = vadd.f32 %v220, %v291
    %v293 = vpop.f32.mrb[0].mxu0
    %294 = vdwg.mxu0
    %vm295 = vcmask 64512
    %v296 = vsel %vm295, %v292, -inf
    %297 = vmax.xlane.f32.xlu0 %v296
    %v298 = vpop.xlane.xlu0 %297
    %v299 = vsub.f32 %v292, %v298
    %v300 = vmul.f32 %v299, 1.442695
    %v301 = vpow.pop %v300
    %v302 = vsel %vm295, %v301, 0.0
    %303 = vadd.xlane.f32.xlu0 %v302
    %v304 = vpop.xlane.xlu0 %303
    %v305 = vrcp.pop %v304
    %v306 = vmul.f32 %v301, %v305
    %v307 = vlog2.pop %v304
    %v308 = vmul.f32 %v307, 0.6931472
    %v309 = vsub.f32 %v299, %v308
    %v311 = vsel %vm295, %v306, 0
    %313 = vmatprep.subr.mxu0 0.0
    %314 = vmatpush1.msra.mxu0 %v48
    %315 = vmatprep.subr.mxu0 0.0
    %316 = vmatpush1.msra.mxu0 0.0
    %317 = vmatprep.subr.mxu0 0.0
    %318 = vmatpush1.msra.mxu0 0.0
    %319 = vmatprep.subr.mxu0 0.0
    %320 = vmatpush1.msra.mxu0 0.0
    %321 = vmatprep.subr.mxu0 0.0
    %322 = vmatpush1.msra.mxu0 0.0
    %323 = vmatprep.subr.mxu0 0.0
    %324 = vmatpush1.msra.mxu0 0.0
    %325 = vmatprep.subr.mxu0 0.0
    %326 = vmatpush1.msra.mxu0 0.0
    %327 = vmatprep.subr.mxu0 0.0
    %328 = vmatpush1.msra.mxu0 0.0
    %329 = vmatprep.subr.mxu0 0.0
    %330 = vmatpush1.msra.mxu0 0.0
    %331 = vmatprep.subr.mxu0 0.0
    %332 = vmatpush1.msra.mxu0 0.0
    %333 = vmatprep.subr.mxu0 0.0
    %334 = vmatpush1.msra.mxu0 0.0
    %335 = vmatprep.subr.mxu0 0.0
    %336 = vmatpush1.msra.mxu0 0.0
    %337 = vmatprep.subr.mxu0 0.0
    %338 = vmatpush1.msra.mxu0 0.0
    %339 = vmatprep.subr.mxu0 0.0
    %340 = vmatpush1.msra.mxu0 0.0
    %341 = vmatprep.subr.mxu0 0.0
    %342 = vmatpush1.msra.mxu0 0.0
    %343 = vmatprep.subr.mxu0 0.0
    %344 = vmatpush1.msra.mxu0 0.0
    %345 = vmatprep.subr.mxu0 0.0
    %346 = vmatpush1.msra.mxu0 0.0
    %347 = vmatprep.subr.mxu0 0.0
    %348 = vmatpush1.msra.mxu0 0.0
    %349 = vmatprep.subr.mxu0 0.0
    %350 = vmatpush1.msra.mxu0 0.0
    %351 = vmatprep.subr.mxu0 0.0
    %352 = vmatpush1.msra.mxu0 0.0
    %353 = vmatprep.subr.mxu0 0.0
    %354 = vmatpush1.msra.mxu0 0.0
    %355 = vmatprep.subr.mxu0 0.0
    %356 = vmatpush1.msra.mxu0 0.0
    %357 = vmatprep.subr.mxu0 0.0
    %358 = vmatpush1.msra.mxu0 0.0
    %359 = vmatprep.subr.mxu0 0.0
    %360 = vmatpush1.msra.mxu0 0.0
    %361 = vmatprep.subr.mxu0 0.0
    %362 = vmatpush1.msra.mxu0 0.0
    %363 = vmatprep.subr.mxu0 0.0
    %364 = vmatpush1.msra.mxu0 0.0
    %365 = vmatprep.subr.mxu0 0.0
    %366 = vmatpush1.msra.mxu0 0.0
    %367 = vmatprep.subr.mxu0 0.0
    %368 = vmatpush1.msra.mxu0 0.0
    %369 = vmatprep.subr.mxu0 0.0
    %370 = vmatpush1.msra.mxu0 0.0
    %371 = vmatprep.subr.mxu0 0.0
    %372 = vmatpush1.msra.mxu0 0.0
    %373 = vmatprep.subr.mxu0 0.0
    %374 = vmatpush1.msra.mxu0 0.0
    %375 = vmatprep.subr.mxu0 0.0
    %376 = vmatpush1.msra.mxu0 0.0
    %377 = vmatprep.mubr.f32.mxu0 0.0
    %378 = vmatmul.mubr.f32.gmra.mrb[0].mxu0 %v311
    %v379 = vpop.f32.mrb[0].mxu0
    %v380 = vadd.f32 0.0, %v379
    %v381 = vpop.f32.mrb[0].mxu0
    %382 = vdwg.mxu0
    %384 = vrot.lane.b32.xlu0 %v203, 32
    %v385 = vpop.permute.xlu0 %384
    %388 = vrot.lane.b32.xlu0 %v309, 64
    %v389 = vpop.permute.xlu0 %388
    %391 = vrot.lane.b32.xlu0 %v218, 72
    %v392 = vpop.permute.xlu0 %391
    %v394 = vsel %vm53, %v380, %v385
    %vm395 = vcmask 523264
    %v396 = vsel %vm395, %v394, %v389
    %vm397 = vcmask 588800
    %v398 = vsel %vm397, %v396, %v392
    %vm399 = vcmask 719872
    %v400 = vsel %vm399, %v398, 0.0
    %401 = vst [vmem:[#allocation7] sm:$0xff] %v400
    // Predicated region
    $region18: #{tpu_custom_call.1} parent=1 // pred_check
      _
    $region19: #{tpu_custom_call.1} parent=1 // pred_check_branch
      %403 = sbr.rel (0) target = $region21
    $region20: #{tpu_custom_call.1} parent=1 // pred_region
      %s405 = ssub.s32 128, 128
      %406 = vsyncadd [#allocation4], %s405
      %s408 = sshll.u32 [#allocation7], 4
      %s409 = int_to_ptr.vmem [resolvable:$true] %s408
      %411 = dma.vmem_to_hbm [thread:$0]  %s409, 128, %s2, [#allocation4]
    $region21: #{tpu_custom_call.1} parent=1 // pred_fallthru
      _
    // Predicated region
    $region22: #{tpu_custom_call.1} parent=1 // pred_check
      _
    $region23: #{tpu_custom_call.1} parent=1 // pred_check_branch
      %413 = sbr.rel (0) target = $region25
    $region24: #{tpu_custom_call.1} parent=1 // pred_region
      %414 = dma.done [#allocation4], 128
    $region25: #{tpu_custom_call.1} parent=1 // pred_fallthru
      _
    %415 = vsyncpa [#allocation3], 1
    %416 = vsyncpa [#allocation6], 1
    %417 = vsyncpa [#allocation4], 1

</llo_original>
